<compile_context>
chip_gen: v7x
topology: tpu7x:2x2x1
jax: 0.10.0
libtpu: 0.0.40
codegen_flags: <defaults>
</compile_context>

<pallas_src>
import functools

import jax
import jax.numpy as jnp
import numpy as np
from jax.experimental import pallas as pl
from jax.experimental.pallas import tpu as pltpu


def _make_kernel(num_qubits: int):
    """Kernel: probs (1, n_states_pad) f32, w (num_qubits, n_out_pad) f32
    -> out (1, n_out_pad) f32."""

    def kernel(probs_ref, w_ref, out_ref):
        probs = probs_ref[...]                                # (1, n_states_pad)
        n_states_pad = probs.shape[1]
        # Basis-state index along the lane axis (iota must be >= 2D on TPU).
        state_idx = jax.lax.broadcasted_iota(jnp.int32, (1, n_states_pad), 1)

        acc = jnp.zeros(out_ref.shape, jnp.float32)           # (1, n_out_pad)
        # Fully unrolled static loop over qubits (num_qubits is small); all of
        # this is a single basic block visible to the LLO scheduler.
        for q in range(num_qubits):
            # PennyLane big-endian wire ordering: bit_q(s) = (s >> (n-1-q)) & 1.
            bit = (state_idx >> (num_qubits - 1 - q)) & 1     # (1, n_states_pad)
            sign = (1 - 2 * bit).astype(jnp.float32)          # +/- 1
            # <Z_q> = sum_s probs[s] * sign[s]   (VPU multiply + XLU lane reduce).
            # Zero-padded probs lanes contribute 0 regardless of sign.
            expval = jnp.sum(probs * sign, axis=-1, keepdims=True)  # (1, 1)
            # Dense layer contribution: expval_q * W[q, :]  (broadcast FMA).
            w_row = w_ref[pl.ds(q, 1), :]                     # (1, n_out_pad)
            acc = acc + expval * w_row
        out_ref[...] = acc

    return kernel


def _round_up(x: int, m: int) -> int:
    return ((x + m - 1) // m) * m


@jax.jit
def dense_quantum_forward(probs, weights):
    """probs: (2**num_qubits,) f32, weights: (num_qubits, num_outputs) f32
    -> (num_outputs,) f32."""
    num_qubits, num_outputs = weights.shape
    n_states = probs.shape[-1]

    # Pad both lane dims to multiples of 128 so loads/stores are unmasked.
    n_states_pad = _round_up(max(n_states, 128), 128)
    n_out_pad = _round_up(max(num_outputs, 128), 128)

    probs2d = jnp.pad(probs.astype(jnp.float32).reshape(1, n_states),
                      ((0, 0), (0, n_states_pad - n_states)))
    w_pad = jnp.pad(weights.astype(jnp.float32),
                    ((0, 0), (0, n_out_pad - num_outputs)))

    out = pl.pallas_call(
        _make_kernel(num_qubits),
        out_shape=jax.ShapeDtypeStruct((1, n_out_pad), jnp.float32),
        # Gridless call: whole arrays resident in VMEM, no pipeline machinery.
        in_specs=[
            pl.BlockSpec(memory_space=pltpu.MemorySpace.VMEM),
            pl.BlockSpec(memory_space=pltpu.MemorySpace.VMEM),
        ],
        out_specs=pl.BlockSpec(memory_space=pltpu.MemorySpace.VMEM),
    )(probs2d, w_pad)
    return out[0, :num_outputs]


if __name__ == "__main__":
    num_qubits = 8
    num_outputs = 32
    n_states = 2 ** num_qubits

    key = jax.random.PRNGKey(0)
    # The torch module ignores `inputs` (only converts to a list); mirror that.
    x = jax.random.normal(key, (num_qubits,), dtype=jnp.float32)  # unused, as in the module

    # ---- Validation with NON-degenerate data (random probs + random weights) ----
    k1, k2 = jax.random.split(key)
    rnd_probs = jax.nn.softmax(jax.random.normal(k1, (n_states,), dtype=jnp.float32))
    rnd_w = jax.random.normal(k2, (num_qubits, num_outputs), dtype=jnp.float32)

    got = jax.block_until_ready(dense_quantum_forward(rnd_probs, rnd_w))

    # Pure-numpy reference: signs[s, q] = (-1)^{bit_q(s)}, big-endian wires.
    s_idx = np.arange(n_states)[:, None]
    q_idx = np.arange(num_qubits)[None, :]
    bits = (s_idx >> (num_qubits - 1 - q_idx)) & 1
    signs_np = (1.0 - 2.0 * bits).astype(np.float32)
    ref = (np.asarray(rnd_probs)[None, :] @ signs_np @ np.asarray(rnd_w))[0]
    np.testing.assert_allclose(np.asarray(got), ref, rtol=1e-5, atol=1e-5)

    # ---- Actual module semantics: Hadamard state -> uniform probs; zero weights ----
    probs = jnp.full((n_states,), 1.0 / n_states, dtype=jnp.float32)
    weights = jnp.zeros((num_qubits, num_outputs), dtype=jnp.float32)
    out = jax.block_until_ready(dense_quantum_forward(probs, weights))

    assert out.shape == (num_outputs,)
    assert out.dtype == jnp.float32
    # <Z_i> = 0 in the uniform superposition and weights are zero -> exact zeros.
    np.testing.assert_allclose(np.asarray(out), np.zeros(num_outputs, np.float32), atol=1e-6)

    # TODO(synk): the PennyLane qnode (generic state-vector simulation) has no
    # Pallas equivalent; it is replaced by the analytic uniform-superposition
    # probabilities, with the PauliZ measurement reduction and the dense matmul
    # fused inside the kernel.
    print("KERNEL_OK")
</pallas_src>

<mosaic_0001>
module attributes {stable_mosaic.version = 11 : i64} {
  func.func @kernel(%arg0: memref<1x256xf32, #tpu.memory_space<vmem>>, %arg1: memref<8x128xf32, #tpu.memory_space<vmem>>, %arg2: memref<1x128xf32, #tpu.memory_space<vmem>>) attributes {dimension_semantics = [], scalar_prefetch = 0 : i64, scratch_operands = 0 : i64, tpu.core_type = #tpu.core_type<tc>} {
    %c0 = arith.constant 0 : index
    %c0_0 = arith.constant 0 : index
    %0 = vector.load %arg0[%c0, %c0_0] : memref<1x256xf32, #tpu.memory_space<vmem>>, vector<1x256xf32>
    %1 = tpu.iota {dimensions = array<i32: 1>} : vector<1x256xi32>
    %cst = arith.constant 0.000000e+00 : f32
    %2 = vector.broadcast %cst : f32 to vector<1x128xf32>
    %c7_i32 = arith.constant 7 : i32
    %3 = vector.broadcast %c7_i32 : i32 to vector<1x256xi32>
    %4 = arith.shrsi %1, %3 : vector<1x256xi32>
    %c1_i32 = arith.constant 1 : i32
    %5 = vector.broadcast %c1_i32 : i32 to vector<1x256xi32>
    %6 = arith.andi %4, %5 : vector<1x256xi32>
    %c2_i32 = arith.constant 2 : i32
    %7 = vector.broadcast %c2_i32 : i32 to vector<1x256xi32>
    %8 = arith.muli %7, %6 : vector<1x256xi32>
    %c1_i32_1 = arith.constant 1 : i32
    %9 = vector.broadcast %c1_i32_1 : i32 to vector<1x256xi32>
    %10 = arith.subi %9, %8 : vector<1x256xi32>
    %11 = arith.sitofp %10 : vector<1x256xi32> to vector<1x256xf32>
    %12 = arith.mulf %0, %11 : vector<1x256xf32>
    %cst_2 = arith.constant dense<0.000000e+00> : vector<1xf32>
    %13 = vector.multi_reduction <add>, %12, %cst_2 [1] : vector<1x256xf32> to vector<1xf32>
    %14 = vector.shape_cast %13 : vector<1xf32> to vector<1x1xf32>
    %c0_3 = arith.constant 0 : index
    %c0_4 = arith.constant 0 : index
    %15 = vector.load %arg1[%c0_3, %c0_4] : memref<8x128xf32, #tpu.memory_space<vmem>>, vector<1x128xf32>
    %16 = vector.broadcast %14 : vector<1x1xf32> to vector<1x128xf32>
    %17 = arith.mulf %16, %15 : vector<1x128xf32>
    %18 = arith.addf %2, %17 : vector<1x128xf32>
    %c6_i32 = arith.constant 6 : i32
    %19 = vector.broadcast %c6_i32 : i32 to vector<1x256xi32>
    %20 = arith.shrsi %1, %19 : vector<1x256xi32>
    %c1_i32_5 = arith.constant 1 : i32
    %21 = vector.broadcast %c1_i32_5 : i32 to vector<1x256xi32>
    %22 = arith.andi %20, %21 : vector<1x256xi32>
    %c2_i32_6 = arith.constant 2 : i32
    %23 = vector.broadcast %c2_i32_6 : i32 to vector<1x256xi32>
    %24 = arith.muli %23, %22 : vector<1x256xi32>
    %c1_i32_7 = arith.constant 1 : i32
    %25 = vector.broadcast %c1_i32_7 : i32 to vector<1x256xi32>
    %26 = arith.subi %25, %24 : vector<1x256xi32>
    %27 = arith.sitofp %26 : vector<1x256xi32> to vector<1x256xf32>
    %28 = arith.mulf %0, %27 : vector<1x256xf32>
    %cst_8 = arith.constant dense<0.000000e+00> : vector<1xf32>
    %29 = vector.multi_reduction <add>, %28, %cst_8 [1] : vector<1x256xf32> to vector<1xf32>
    %30 = vector.shape_cast %29 : vector<1xf32> to vector<1x1xf32>
    %c1 = arith.constant 1 : index
    %c0_9 = arith.constant 0 : index
    %31 = vector.load %arg1[%c1, %c0_9] : memref<8x128xf32, #tpu.memory_space<vmem>>, vector<1x128xf32>
    %32 = vector.broadcast %30 : vector<1x1xf32> to vector<1x128xf32>
    %33 = arith.mulf %32, %31 : vector<1x128xf32>
    %34 = arith.addf %18, %33 : vector<1x128xf32>
    %c5_i32 = arith.constant 5 : i32
    %35 = vector.broadcast %c5_i32 : i32 to vector<1x256xi32>
    %36 = arith.shrsi %1, %35 : vector<1x256xi32>
    %c1_i32_10 = arith.constant 1 : i32
    %37 = vector.broadcast %c1_i32_10 : i32 to vector<1x256xi32>
    %38 = arith.andi %36, %37 : vector<1x256xi32>
    %c2_i32_11 = arith.constant 2 : i32
    %39 = vector.broadcast %c2_i32_11 : i32 to vector<1x256xi32>
    %40 = arith.muli %39, %38 : vector<1x256xi32>
    %c1_i32_12 = arith.constant 1 : i32
    %41 = vector.broadcast %c1_i32_12 : i32 to vector<1x256xi32>
    %42 = arith.subi %41, %40 : vector<1x256xi32>
    %43 = arith.sitofp %42 : vector<1x256xi32> to vector<1x256xf32>
    %44 = arith.mulf %0, %43 : vector<1x256xf32>
    %cst_13 = arith.constant dense<0.000000e+00> : vector<1xf32>
    %45 = vector.multi_reduction <add>, %44, %cst_13 [1] : vector<1x256xf32> to vector<1xf32>
    %46 = vector.shape_cast %45 : vector<1xf32> to vector<1x1xf32>
    %c2 = arith.constant 2 : index
    %c0_14 = arith.constant 0 : index
    %47 = vector.load %arg1[%c2, %c0_14] : memref<8x128xf32, #tpu.memory_space<vmem>>, vector<1x128xf32>
    %48 = vector.broadcast %46 : vector<1x1xf32> to vector<1x128xf32>
    %49 = arith.mulf %48, %47 : vector<1x128xf32>
    %50 = arith.addf %34, %49 : vector<1x128xf32>
    %c4_i32 = arith.constant 4 : i32
    %51 = vector.broadcast %c4_i32 : i32 to vector<1x256xi32>
    %52 = arith.shrsi %1, %51 : vector<1x256xi32>
    %c1_i32_15 = arith.constant 1 : i32
    %53 = vector.broadcast %c1_i32_15 : i32 to vector<1x256xi32>
    %54 = arith.andi %52, %53 : vector<1x256xi32>
    %c2_i32_16 = arith.constant 2 : i32
    %55 = vector.broadcast %c2_i32_16 : i32 to vector<1x256xi32>
    %56 = arith.muli %55, %54 : vector<1x256xi32>
    %c1_i32_17 = arith.constant 1 : i32
    %57 = vector.broadcast %c1_i32_17 : i32 to vector<1x256xi32>
    %58 = arith.subi %57, %56 : vector<1x256xi32>
    %59 = arith.sitofp %58 : vector<1x256xi32> to vector<1x256xf32>
    %60 = arith.mulf %0, %59 : vector<1x256xf32>
    %cst_18 = arith.constant dense<0.000000e+00> : vector<1xf32>
    %61 = vector.multi_reduction <add>, %60, %cst_18 [1] : vector<1x256xf32> to vector<1xf32>
    %62 = vector.shape_cast %61 : vector<1xf32> to vector<1x1xf32>
    %c3 = arith.constant 3 : index
    %c0_19 = arith.constant 0 : index
    %63 = vector.load %arg1[%c3, %c0_19] : memref<8x128xf32, #tpu.memory_space<vmem>>, vector<1x128xf32>
    %64 = vector.broadcast %62 : vector<1x1xf32> to vector<1x128xf32>
    %65 = arith.mulf %64, %63 : vector<1x128xf32>
    %66 = arith.addf %50, %65 : vector<1x128xf32>
    %c3_i32 = arith.constant 3 : i32
    %67 = vector.broadcast %c3_i32 : i32 to vector<1x256xi32>
    %68 = arith.shrsi %1, %67 : vector<1x256xi32>
    %c1_i32_20 = arith.constant 1 : i32
    %69 = vector.broadcast %c1_i32_20 : i32 to vector<1x256xi32>
    %70 = arith.andi %68, %69 : vector<1x256xi32>
    %c2_i32_21 = arith.constant 2 : i32
    %71 = vector.broadcast %c2_i32_21 : i32 to vector<1x256xi32>
    %72 = arith.muli %71, %70 : vector<1x256xi32>
    %c1_i32_22 = arith.constant 1 : i32
    %73 = vector.broadcast %c1_i32_22 : i32 to vector<1x256xi32>
    %74 = arith.subi %73, %72 : vector<1x256xi32>
    %75 = arith.sitofp %74 : vector<1x256xi32> to vector<1x256xf32>
    %76 = arith.mulf %0, %75 : vector<1x256xf32>
    %cst_23 = arith.constant dense<0.000000e+00> : vector<1xf32>
    %77 = vector.multi_reduction <add>, %76, %cst_23 [1] : vector<1x256xf32> to vector<1xf32>
    %78 = vector.shape_cast %77 : vector<1xf32> to vector<1x1xf32>
    %c4 = arith.constant 4 : index
    %c0_24 = arith.constant 0 : index
    %79 = vector.load %arg1[%c4, %c0_24] : memref<8x128xf32, #tpu.memory_space<vmem>>, vector<1x128xf32>
    %80 = vector.broadcast %78 : vector<1x1xf32> to vector<1x128xf32>
    %81 = arith.mulf %80, %79 : vector<1x128xf32>
    %82 = arith.addf %66, %81 : vector<1x128xf32>
    %c2_i32_25 = arith.constant 2 : i32
    %83 = vector.broadcast %c2_i32_25 : i32 to vector<1x256xi32>
    %84 = arith.shrsi %1, %83 : vector<1x256xi32>
    %c1_i32_26 = arith.constant 1 : i32
    %85 = vector.broadcast %c1_i32_26 : i32 to vector<1x256xi32>
    %86 = arith.andi %84, %85 : vector<1x256xi32>
    %c2_i32_27 = arith.constant 2 : i32
    %87 = vector.broadcast %c2_i32_27 : i32 to vector<1x256xi32>
    %88 = arith.muli %87, %86 : vector<1x256xi32>
    %c1_i32_28 = arith.constant 1 : i32
    %89 = vector.broadcast %c1_i32_28 : i32 to vector<1x256xi32>
    %90 = arith.subi %89, %88 : vector<1x256xi32>
    %91 = arith.sitofp %90 : vector<1x256xi32> to vector<1x256xf32>
    %92 = arith.mulf %0, %91 : vector<1x256xf32>
    %cst_29 = arith.constant dense<0.000000e+00> : vector<1xf32>
    %93 = vector.multi_reduction <add>, %92, %cst_29 [1] : vector<1x256xf32> to vector<1xf32>
    %94 = vector.shape_cast %93 : vector<1xf32> to vector<1x1xf32>
    %c5 = arith.constant 5 : index
    %c0_30 = arith.constant 0 : index
    %95 = vector.load %arg1[%c5, %c0_30] : memref<8x128xf32, #tpu.memory_space<vmem>>, vector<1x128xf32>
    %96 = vector.broadcast %94 : vector<1x1xf32> to vector<1x128xf32>
    %97 = arith.mulf %96, %95 : vector<1x128xf32>
    %98 = arith.addf %82, %97 : vector<1x128xf32>
    %c1_i32_31 = arith.constant 1 : i32
    %99 = vector.broadcast %c1_i32_31 : i32 to vector<1x256xi32>
    %100 = arith.shrsi %1, %99 : vector<1x256xi32>
    %c1_i32_32 = arith.constant 1 : i32
    %101 = vector.broadcast %c1_i32_32 : i32 to vector<1x256xi32>
    %102 = arith.andi %100, %101 : vector<1x256xi32>
    %c2_i32_33 = arith.constant 2 : i32
    %103 = vector.broadcast %c2_i32_33 : i32 to vector<1x256xi32>
    %104 = arith.muli %103, %102 : vector<1x256xi32>
    %c1_i32_34 = arith.constant 1 : i32
    %105 = vector.broadcast %c1_i32_34 : i32 to vector<1x256xi32>
    %106 = arith.subi %105, %104 : vector<1x256xi32>
    %107 = arith.sitofp %106 : vector<1x256xi32> to vector<1x256xf32>
    %108 = arith.mulf %0, %107 : vector<1x256xf32>
    %cst_35 = arith.constant dense<0.000000e+00> : vector<1xf32>
    %109 = vector.multi_reduction <add>, %108, %cst_35 [1] : vector<1x256xf32> to vector<1xf32>
    %110 = vector.shape_cast %109 : vector<1xf32> to vector<1x1xf32>
    %c6 = arith.constant 6 : index
    %c0_36 = arith.constant 0 : index
    %111 = vector.load %arg1[%c6, %c0_36] : memref<8x128xf32, #tpu.memory_space<vmem>>, vector<1x128xf32>
    %112 = vector.broadcast %110 : vector<1x1xf32> to vector<1x128xf32>
    %113 = arith.mulf %112, %111 : vector<1x128xf32>
    %114 = arith.addf %98, %113 : vector<1x128xf32>
    %c0_i32 = arith.constant 0 : i32
    %115 = vector.broadcast %c0_i32 : i32 to vector<1x256xi32>
    %116 = arith.shrsi %1, %115 : vector<1x256xi32>
    %c1_i32_37 = arith.constant 1 : i32
    %117 = vector.broadcast %c1_i32_37 : i32 to vector<1x256xi32>
    %118 = arith.andi %116, %117 : vector<1x256xi32>
    %c2_i32_38 = arith.constant 2 : i32
    %119 = vector.broadcast %c2_i32_38 : i32 to vector<1x256xi32>
    %120 = arith.muli %119, %118 : vector<1x256xi32>
    %c1_i32_39 = arith.constant 1 : i32
    %121 = vector.broadcast %c1_i32_39 : i32 to vector<1x256xi32>
    %122 = arith.subi %121, %120 : vector<1x256xi32>
    %123 = arith.sitofp %122 : vector<1x256xi32> to vector<1x256xf32>
    %124 = arith.mulf %0, %123 : vector<1x256xf32>
    %cst_40 = arith.constant dense<0.000000e+00> : vector<1xf32>
    %125 = vector.multi_reduction <add>, %124, %cst_40 [1] : vector<1x256xf32> to vector<1xf32>
    %126 = vector.shape_cast %125 : vector<1xf32> to vector<1x1xf32>
    %c7 = arith.constant 7 : index
    %c0_41 = arith.constant 0 : index
    %127 = vector.load %arg1[%c7, %c0_41] : memref<8x128xf32, #tpu.memory_space<vmem>>, vector<1x128xf32>
    %128 = vector.broadcast %126 : vector<1x1xf32> to vector<1x128xf32>
    %129 = arith.mulf %128, %127 : vector<1x128xf32>
    %130 = arith.addf %114, %129 : vector<1x128xf32>
    %c0_42 = arith.constant 0 : index
    %c0_43 = arith.constant 0 : index
    %131 = vector.load %arg2[%c0_42, %c0_43] : memref<1x128xf32, #tpu.memory_space<vmem>>, vector<1x128xf32>
    tpu.vector_store %arg2[%c0_42, %c0_43], %130 {strides = array<i32>} : memref<1x128xf32, #tpu.memory_space<vmem>>, vector<1x128xf32>,
    return
  }
}

</mosaic_0001>

<llo_original>
// kernel: dense_quantum_forward.1
$region0: #{dense_quantum_forward.1}
  #allocation0 [shape = 'u32[]', space=smem, size = 0x4, offset = 0x4, fixed_abs, tag = 'smem constant byte address 0x4 - core index']
  #allocation1 [shape = 'u32[144,128]{1,0:T(1,128)}', space=vmem, size = 0x12000, scoped, tag = 'internal scratch']
  %s0 = inlined_call_operand.vmem [shape: f32[1,256], index: 0, kind: input, shape index: {}]
  %s1 = inlined_call_operand.vmem [shape: f32[8,128], index: 1, kind: input, shape index: {}]
  %s2 = inlined_call_operand.vmem [shape: f32[1,128], index: 2, kind: output, shape index: {}]
  %s3 = sld [smem:[#allocation0]]
  $region18: #{dense_quantum_forward.1} parent=0
    _
  %s5 = ssub.s32 1, %s3
  %s6 = scalar_select 0, %s5, %s3
  // Predicated region
  $region2: #{dense_quantum_forward.1} parent=0 // pred_check
    _
  $region3: #{dense_quantum_forward.1} parent=0 // pred_check_branch
    %8 = sbr.rel (0) target = $region5
  $region4: #{dense_quantum_forward.1} parent=0 // pred_region
    _
  $region5: #{dense_quantum_forward.1} parent=0 // pred_fallthru
    _
  // Predicated region
  $region6: #{dense_quantum_forward.1} parent=0 // pred_check
    _
  $region7: #{dense_quantum_forward.1} parent=0 // pred_check_branch
    %10 = sbr.rel (0) target = $region9
  $region8: #{dense_quantum_forward.1} parent=0 // pred_region
    _
  $region9: #{dense_quantum_forward.1} parent=0 // pred_fallthru
    _
  %v11 = vld [vmem:[%s0] sm:$0x3]
  %v12 = vlaneseq
  %v13 = vand.u32 %v12, 127
  %v14 = vadd.s32 %v13, 128
  %v15 = vshra.s32 %v13, 7
  %v16 = vshra.s32 %v14, 7
  %v17 = vand.u32 %v15, 1
  %v18 = vand.u32 %v16, 1
  %v19 = vmul.u32 %v17, 2
  %v20 = vmul.u32 %v18, 2
  %v21 = vsub.s32 1, %v19
  %v22 = vsub.s32 1, %v20
  %v23 = vcvt.s32.f32 %v21
  %v24 = vcvt.s32.f32 %v22
  %v27 = vcombine.low %v23, %v24
  %v29 = vunpack.c.l.s4 1966171168
  %v30 = vunpack.c.0.s8 %v29
  %v31 = vlaneseq
  %v32 = vshrl.u32 %v31, 7
  %v33 = vsub.s32 %v30, %v32
  %v34 = vrot.slane %v27, %v33
  %v36 = vunpack.c.l.s4 1966171168
  %v37 = vunpack.c.0.s8 %v36
  %v38 = vlaneseq
  %v39 = vshrl.u32 %v38, 7
  %v40 = vsub.s32 %v37, %v39
  %v41 = vrot.slane %v34, %v40
  %v43 = vmul.f32 %v11, %v41
  %v45 = vlaneseq
  %v46 = vshrl.u32 %v45, 7
  %v47 = vsub.s32 0, %v46
  %v48 = vrot.slane %v43, %v47
  %v49 = vlaneseq
  %v50 = vshrl.u32 %v49, 7
  %v51 = vsub.s32 1, %v50
  %v52 = vrot.slane %v43, %v51
  %vm55 = vcmask 1040384
  %v56 = vsel %vm55, %v48, 0.0
  %v57 = vsel %vm55, %v52, 0.0
  %v58 = vadd.f32 %v56, %v57
  %59 = vadd.xlane.f32.xlu0 %v58
  %v60 = vpop.xlane.xlu0 %59
  %v61 = vld [vmem:[%s1] sm:$0x1]
  %v62 = vmul.f32 %v60, %v61
  %v63 = vadd.f32 %v62, 0.0
  %v64 = vshra.s32 %v13, 6
  %v65 = vshra.s32 %v14, 6
  %v66 = vand.u32 %v64, 1
  %v67 = vand.u32 %v65, 1
  %v68 = vmul.u32 %v66, 2
  %v69 = vmul.u32 %v67, 2
  %v70 = vsub.s32 1, %v68
  %v71 = vsub.s32 1, %v69
  %v72 = vcvt.s32.f32 %v70
  %v73 = vcvt.s32.f32 %v71
  %v76 = vcombine.low %v72, %v73
  %v78 = vunpack.c.l.s4 1966171168
  %v79 = vunpack.c.0.s8 %v78
  %v80 = vlaneseq
  %v81 = vshrl.u32 %v80, 7
  %v82 = vsub.s32 %v79, %v81
  %v83 = vrot.slane %v76, %v82
  %v85 = vunpack.c.l.s4 1966171168
  %v86 = vunpack.c.0.s8 %v85
  %v87 = vlaneseq
  %v88 = vshrl.u32 %v87, 7
  %v89 = vsub.s32 %v86, %v88
  %v90 = vrot.slane %v83, %v89
  %v92 = vmul.f32 %v11, %v90
  %v94 = vlaneseq
  %v95 = vshrl.u32 %v94, 7
  %v96 = vsub.s32 0, %v95
  %v97 = vrot.slane %v92, %v96
  %v98 = vlaneseq
  %v99 = vshrl.u32 %v98, 7
  %v100 = vsub.s32 1, %v99
  %v101 = vrot.slane %v92, %v100
  %v104 = vsel %vm55, %v97, 0.0
  %v105 = vsel %vm55, %v101, 0.0
  %v106 = vadd.f32 %v104, %v105
  %107 = vadd.xlane.f32.xlu0 %v106
  %v108 = vpop.xlane.xlu0 %107
  %v109 = vld [vmem:[%s1 + $0x1] sm:$0x1]
  %v110 = vmul.f32 %v108, %v109
  %v111 = vadd.f32 %v63, %v110
  %v112 = vshra.s32 %v13, 5
  %v113 = vshra.s32 %v14, 5
  %v114 = vand.u32 %v112, 1
  %v115 = vand.u32 %v113, 1
  %v116 = vmul.u32 %v114, 2
  %v117 = vmul.u32 %v115, 2
  %v118 = vsub.s32 1, %v116
  %v119 = vsub.s32 1, %v117
  %v120 = vcvt.s32.f32 %v118
  %v121 = vcvt.s32.f32 %v119
  %v124 = vcombine.low %v120, %v121
  %v126 = vunpack.c.l.s4 1966171168
  %v127 = vunpack.c.0.s8 %v126
  %v128 = vlaneseq
  %v129 = vshrl.u32 %v128, 7
  %v130 = vsub.s32 %v127, %v129
  %v131 = vrot.slane %v124, %v130
  %v133 = vunpack.c.l.s4 1966171168
  %v134 = vunpack.c.0.s8 %v133
  %v135 = vlaneseq
  %v136 = vshrl.u32 %v135, 7
  %v137 = vsub.s32 %v134, %v136
  %v138 = vrot.slane %v131, %v137
  %v140 = vmul.f32 %v11, %v138
  %v142 = vlaneseq
  %v143 = vshrl.u32 %v142, 7
  %v144 = vsub.s32 0, %v143
  %v145 = vrot.slane %v140, %v144
  %v146 = vlaneseq
  %v147 = vshrl.u32 %v146, 7
  %v148 = vsub.s32 1, %v147
  %v149 = vrot.slane %v140, %v148
  %v152 = vsel %vm55, %v145, 0.0
  %v153 = vsel %vm55, %v149, 0.0
  %v154 = vadd.f32 %v152, %v153
  %155 = vadd.xlane.f32.xlu0 %v154
  %v156 = vpop.xlane.xlu0 %155
  %v157 = vld [vmem:[%s1 + $0x2] sm:$0x1]
  %v158 = vmul.f32 %v156, %v157
  %v159 = vadd.f32 %v111, %v158
  %v160 = vshra.s32 %v13, 4
  %v161 = vshra.s32 %v14, 4
  %v162 = vand.u32 %v160, 1
  %v163 = vand.u32 %v161, 1
  %v164 = vmul.u32 %v162, 2
  %v165 = vmul.u32 %v163, 2
  %v166 = vsub.s32 1, %v164
  %v167 = vsub.s32 1, %v165
  %v168 = vcvt.s32.f32 %v166
  %v169 = vcvt.s32.f32 %v167
  %v172 = vcombine.low %v168, %v169
  %v174 = vunpack.c.l.s4 1966171168
  %v175 = vunpack.c.0.s8 %v174
  %v176 = vlaneseq
  %v177 = vshrl.u32 %v176, 7
  %v178 = vsub.s32 %v175, %v177
  %v179 = vrot.slane %v172, %v178
  %v181 = vunpack.c.l.s4 1966171168
  %v182 = vunpack.c.0.s8 %v181
  %v183 = vlaneseq
  %v184 = vshrl.u32 %v183, 7
  %v185 = vsub.s32 %v182, %v184
  %v186 = vrot.slane %v179, %v185
  %v188 = vmul.f32 %v11, %v186
  %v190 = vlaneseq
  %v191 = vshrl.u32 %v190, 7
  %v192 = vsub.s32 0, %v191
  %v193 = vrot.slane %v188, %v192
  %v194 = vlaneseq
  %v195 = vshrl.u32 %v194, 7
  %v196 = vsub.s32 1, %v195
  %v197 = vrot.slane %v188, %v196
  %v200 = vsel %vm55, %v193, 0.0
  %v201 = vsel %vm55, %v197, 0.0
  %v202 = vadd.f32 %v200, %v201
  %203 = vadd.xlane.f32.xlu0 %v202
  %v204 = vpop.xlane.xlu0 %203
  %v205 = vld [vmem:[%s1 + $0x3] sm:$0x1]
  %v206 = vmul.f32 %v204, %v205
  %v207 = vadd.f32 %v159, %v206
  %v208 = vshra.s32 %v13, 3
  %v209 = vshra.s32 %v14, 3
  %v210 = vand.u32 %v208, 1
  %v211 = vand.u32 %v209, 1
  %v212 = vmul.u32 %v210, 2
  %v213 = vmul.u32 %v211, 2
  %v214 = vsub.s32 1, %v212
  %v215 = vsub.s32 1, %v213
  %v216 = vcvt.s32.f32 %v214
  %v217 = vcvt.s32.f32 %v215
  %v220 = vcombine.low %v216, %v217
  %v222 = vunpack.c.l.s4 1966171168
  %v223 = vunpack.c.0.s8 %v222
  %v224 = vlaneseq
  %v225 = vshrl.u32 %v224, 7
  %v226 = vsub.s32 %v223, %v225
  %v227 = vrot.slane %v220, %v226
  %v229 = vunpack.c.l.s4 1966171168
  %v230 = vunpack.c.0.s8 %v229
  %v231 = vlaneseq
  %v232 = vshrl.u32 %v231, 7
  %v233 = vsub.s32 %v230, %v232
  %v234 = vrot.slane %v227, %v233
  %v236 = vmul.f32 %v11, %v234
  %v238 = vlaneseq
  %v239 = vshrl.u32 %v238, 7
  %v240 = vsub.s32 0, %v239
  %v241 = vrot.slane %v236, %v240
  %v242 = vlaneseq
  %v243 = vshrl.u32 %v242, 7
  %v244 = vsub.s32 1, %v243
  %v245 = vrot.slane %v236, %v244
  %v248 = vsel %vm55, %v241, 0.0
  %v249 = vsel %vm55, %v245, 0.0
  %v250 = vadd.f32 %v248, %v249
  %251 = vadd.xlane.f32.xlu0 %v250
  %v252 = vpop.xlane.xlu0 %251
  %v253 = vld [vmem:[%s1 + $0x4] sm:$0x1]
  %v254 = vmul.f32 %v252, %v253
  %v255 = vadd.f32 %v207, %v254
  %v256 = vshra.s32 %v13, 2
  %v257 = vshra.s32 %v14, 2
  %v258 = vand.u32 %v256, 1
  %v259 = vand.u32 %v257, 1
  %v260 = vmul.u32 %v258, 2
  %v261 = vmul.u32 %v259, 2
  %v262 = vsub.s32 1, %v260
  %v263 = vsub.s32 1, %v261
  %v264 = vcvt.s32.f32 %v262
  %v265 = vcvt.s32.f32 %v263
  %v268 = vcombine.low %v264, %v265
  %v270 = vunpack.c.l.s4 1966171168
  %v271 = vunpack.c.0.s8 %v270
  %v272 = vlaneseq
  %v273 = vshrl.u32 %v272, 7
  %v274 = vsub.s32 %v271, %v273
  %v275 = vrot.slane %v268, %v274
  %v277 = vunpack.c.l.s4 1966171168
  %v278 = vunpack.c.0.s8 %v277
  %v279 = vlaneseq
  %v280 = vshrl.u32 %v279, 7
  %v281 = vsub.s32 %v278, %v280
  %v282 = vrot.slane %v275, %v281
  %v284 = vmul.f32 %v11, %v282
  %v286 = vlaneseq
  %v287 = vshrl.u32 %v286, 7
  %v288 = vsub.s32 0, %v287
  %v289 = vrot.slane %v284, %v288
  %v290 = vlaneseq
  %v291 = vshrl.u32 %v290, 7
  %v292 = vsub.s32 1, %v291
  %v293 = vrot.slane %v284, %v292
  %v296 = vsel %vm55, %v289, 0.0
  %v297 = vsel %vm55, %v293, 0.0
  %v298 = vadd.f32 %v296, %v297
  %299 = vadd.xlane.f32.xlu0 %v298
  %v300 = vpop.xlane.xlu0 %299
  %v301 = vld [vmem:[%s1 + $0x5] sm:$0x1]
  %v302 = vmul.f32 %v300, %v301
  %v303 = vadd.f32 %v255, %v302
  %v304 = vshra.s32 %v13, 1
  %v305 = vshra.s32 %v14, 1
  %v306 = vand.u32 %v304, 1
  %v307 = vand.u32 %v305, 1
  %v308 = vmul.u32 %v306, 2
  %v309 = vmul.u32 %v307, 2
  %v310 = vsub.s32 1, %v308
  %v311 = vsub.s32 1, %v309
  %v312 = vcvt.s32.f32 %v310
  %v313 = vcvt.s32.f32 %v311
  %v316 = vcombine.low %v312, %v313
  %v318 = vunpack.c.l.s4 1966171168
  %v319 = vunpack.c.0.s8 %v318
  %v320 = vlaneseq
  %v321 = vshrl.u32 %v320, 7
  %v322 = vsub.s32 %v319, %v321
  %v323 = vrot.slane %v316, %v322
  %v325 = vunpack.c.l.s4 1966171168
  %v326 = vunpack.c.0.s8 %v325
  %v327 = vlaneseq
  %v328 = vshrl.u32 %v327, 7
  %v329 = vsub.s32 %v326, %v328
  %v330 = vrot.slane %v323, %v329
  %v332 = vmul.f32 %v11, %v330
  %v334 = vlaneseq
  %v335 = vshrl.u32 %v334, 7
  %v336 = vsub.s32 0, %v335
  %v337 = vrot.slane %v332, %v336
  %v338 = vlaneseq
  %v339 = vshrl.u32 %v338, 7
  %v340 = vsub.s32 1, %v339
  %v341 = vrot.slane %v332, %v340
  %v344 = vsel %vm55, %v337, 0.0
  %v345 = vsel %vm55, %v341, 0.0
  %v346 = vadd.f32 %v344, %v345
  %347 = vadd.xlane.f32.xlu0 %v346
  %v348 = vpop.xlane.xlu0 %347
  %v349 = vld [vmem:[%s1 + $0x6] sm:$0x1]
  %v350 = vmul.f32 %v348, %v349
  %v351 = vadd.f32 %v303, %v350
  %v352 = vand.u32 %v13, 1
  %v353 = vand.u32 %v14, 1
  %v354 = vmul.u32 %v352, 2
  %v355 = vmul.u32 %v353, 2
  %v356 = vsub.s32 1, %v354
  %v357 = vsub.s32 1, %v355
  %v358 = vcvt.s32.f32 %v356
  %v359 = vcvt.s32.f32 %v357
  %v362 = vcombine.low %v358, %v359
  %v364 = vunpack.c.l.s4 1966171168
  %v365 = vunpack.c.0.s8 %v364
  %v366 = vlaneseq
  %v367 = vshrl.u32 %v366, 7
  %v368 = vsub.s32 %v365, %v367
  %v369 = vrot.slane %v362, %v368
  %v371 = vunpack.c.l.s4 1966171168
  %v372 = vunpack.c.0.s8 %v371
  %v373 = vlaneseq
  %v374 = vshrl.u32 %v373, 7
  %v375 = vsub.s32 %v372, %v374
  %v376 = vrot.slane %v369, %v375
  %v378 = vmul.f32 %v11, %v376
  %v380 = vlaneseq
  %v381 = vshrl.u32 %v380, 7
  %v382 = vsub.s32 0, %v381
  %v383 = vrot.slane %v378, %v382
  %v384 = vlaneseq
  %v385 = vshrl.u32 %v384, 7
  %v386 = vsub.s32 1, %v385
  %v387 = vrot.slane %v378, %v386
  %v390 = vsel %vm55, %v383, 0.0
  %v391 = vsel %vm55, %v387, 0.0
  %v392 = vadd.f32 %v390, %v391
  %393 = vadd.xlane.f32.xlu0 %v392
  %v394 = vpop.xlane.xlu0 %393
  %v395 = vld [vmem:[%s1 + $0x7] sm:$0x1]
  %v396 = vmul.f32 %v394, %v395
  %v397 = vadd.f32 %v351, %v396
  %398 = vst [vmem:[%s2] sm:$0x1] %v397
  // Predicated region
  $region10: #{dense_quantum_forward.1} parent=0 // pred_check
    _
  $region11: #{dense_quantum_forward.1} parent=0 // pred_check_branch
    %400 = sbr.rel (0) target = $region13
  $region12: #{dense_quantum_forward.1} parent=0 // pred_region
    _
  $region13: #{dense_quantum_forward.1} parent=0 // pred_fallthru
    _
  // Predicated region
  $region14: #{dense_quantum_forward.1} parent=0 // pred_check
    _
  $region15: #{dense_quantum_forward.1} parent=0 // pred_check_branch
    %402 = sbr.rel (0) target = $region17
  $region16: #{dense_quantum_forward.1} parent=0 // pred_region
    _
  $region17: #{dense_quantum_forward.1} parent=0 // pred_fallthru
    _

</llo_original>
